<compile_context>
chip_gen: v7x
topology: tpu7x:2x2x1
jax: 0.10.0
libtpu: 0.0.40
codegen_flags: <defaults>
</compile_context>

<pallas_src>
import functools

import jax
import jax.numpy as jnp
from jax.experimental import pallas as pl
from jax.experimental.pallas import tpu as pltpu

_LANES = 128   # every feature dim is zero-padded to 128 lanes
_NVEC = 16     # vector slab sublane count (14 real rows, padded to 16)


# ---------------------------------------------------------------------------
# Fused Pallas kernel: 3 x GINConv -> global_add_pool -> MLP head
# ---------------------------------------------------------------------------
def _fused_gin_kernel(adj_ref, x_ref, w_ref, v_ref, pool_ref, o_ref):
    # adj_ref : [N, N]        bf16   dense adjacency (edge multiplicities)
    # x_ref   : [N, 128]      f32    lane-padded node features
    # w_ref   : [8, 128, 128] bf16   packed weights (zero-padded)
    # v_ref   : [16, 128]     f32    packed biases / BN gamma / BN beta
    # pool_ref: [Gp, N]       bf16   one-hot pooling matrix (padded rows zero)
    # o_ref   : [Gp, 128]     f32    lane-dense output slab (col 0 is the logit)
    adj = adj_ref[...]                     # resident once, reused by all layers
    h = x_ref[...]                         # f32
    inv_n = 1.0 / h.shape[0]

    def vrow(i):                           # static sublane slice of the vec slab
        return v_ref[i:i + 1, :]           # [1, 128] f32

    def gin_layer(h, li):
        w1 = w_ref[2 * li]                 # [128, 128] bf16 (static index)
        w2 = w_ref[2 * li + 1]
        b1, b2 = vrow(4 * li + 0), vrow(4 * li + 1)
        gamma, beta = vrow(4 * li + 2), vrow(4 * li + 3)

        # Aggregation A @ h on the bf16 MXU path, accumulated in f32.
        agg = jnp.dot(adj, h.astype(jnp.bfloat16),
                      preferred_element_type=jnp.float32)
        z = h + agg                        # GIN with eps = 0 (f32 residual)

        # Linear -> ReLU -> Linear, all bf16 MXU / f32 accumulate.
        z = jnp.dot(z.astype(jnp.bfloat16), w1,
                    preferred_element_type=jnp.float32) + b1
        z = jnp.maximum(z, 0.0)
        z = jnp.dot(z.astype(jnp.bfloat16), w2,
                    preferred_element_type=jnp.float32) + b2

        # BatchNorm1d (training-mode batch stats), two-pass variance.
        mean = jnp.sum(z, axis=0, keepdims=True) * inv_n
        zc = z - mean
        var = jnp.sum(zc * zc, axis=0, keepdims=True) * inv_n
        scale = gamma * jax.lax.rsqrt(var + 1e-5)
        return jnp.maximum(zc * scale + beta, 0.0)       # final ReLU

    h = gin_layer(h, 0)
    h = gin_layer(h, 1)
    h = gin_layer(h, 2)

    # global_add_pool (P @ h) + MLP head, written as a lane-dense [Gp,128] slab.
    pooled = jnp.dot(pool_ref[...], h.astype(jnp.bfloat16),
                     preferred_element_type=jnp.float32)
    z = jnp.dot(pooled.astype(jnp.bfloat16), w_ref[6],
                preferred_element_type=jnp.float32) + vrow(12)
    z = jnp.maximum(z, 0.0)
    o_ref[...] = jnp.dot(z.astype(jnp.bfloat16), w_ref[7],
                         preferred_element_type=jnp.float32) + vrow(13)


# ---------------------------------------------------------------------------
# Parameter packing (wrapper-side glue, runs once per call; tiny)
# ---------------------------------------------------------------------------
def _pad2(a, rows, cols):
    return jnp.pad(a, ((0, rows - a.shape[0]), (0, cols - a.shape[1])))


def _pack_params(params):
    w11, b11, w12, b12, g1, be1 = params["conv1"]
    w21, b21, w22, b22, g2, be2 = params["conv2"]
    w31, b31, w32, b32, g3, be3 = params["conv3"]
    w3, b3, w4, b4 = params["mlp"]

    # Weights, each zero-padded to [128,128] -> stacked [8,128,128] bf16 slab.
    # Zero row/col padding keeps the padded lanes exactly zero through every
    # layer (padded gamma/beta are zero as well), so results match the unpadded
    # computation.
    ws = [w11, w12, w21, w22, w31, w32, w3, w4]
    w_slab = jnp.stack([_pad2(w, _LANES, _LANES) for w in ws]
                       ).astype(jnp.bfloat16)

    # Biases / BN gamma / BN beta, each padded to [1,128] -> [16,128] f32 slab.
    vs = [b11, b12, g1, be1, b21, b22, g2, be2, b31, b32, g3, be3, b3, b4]
    v_slab = jnp.concatenate([_pad2(v, 1, _LANES) for v in vs], axis=0)
    v_slab = jnp.pad(v_slab, ((0, _NVEC - v_slab.shape[0]), (0, 0)))
    return w_slab, v_slab


# ---------------------------------------------------------------------------
# Cost estimate (padded dims = what the MXU actually executes)
# ---------------------------------------------------------------------------
def _cost_estimate(n, g_pad):
    flops = 0
    for _ in range(3):
        flops += 2 * n * n * _LANES            # A @ h
        flops += 2 * 2 * n * _LANES * _LANES   # two linears
        flops += 12 * n * _LANES               # BN stats + affine + ReLUs
    flops += 2 * g_pad * n * _LANES            # pooling
    flops += 2 * 2 * g_pad * _LANES * _LANES   # MLP head
    bytes_acc = (n * n * 2 + n * _LANES * 4 + 8 * _LANES * _LANES * 2 +
                 _NVEC * _LANES * 4 + g_pad * n * 2 + g_pad * _LANES * 4)
    return pl.CostEstimate(flops=flops, transcendentals=3 * _LANES,
                           bytes_accessed=bytes_acc)


# ---------------------------------------------------------------------------
# Wrapper
# ---------------------------------------------------------------------------
def my_gin_forward(params, x, edge_index, batch, num_graphs):
    n, f = x.shape
    src, dst = edge_index[0], edge_index[1]

    # Dense adjacency A[dst, src] += 1 (XLA glue; the A @ h matmul is in-kernel).
    # NOTE: bf16 is exact only for edge multiplicities <= 256 (typical graphs).
    adj = jnp.zeros((n, n), jnp.float32).at[dst, src].add(1.0).astype(jnp.bfloat16)

    # One-hot pooling matrix, row-padded to a full 8-sublane tile, bf16 (exact).
    g_pad = max(8, ((num_graphs + 7) // 8) * 8)
    pool = (batch[None, :] == jnp.arange(g_pad)[:, None]).astype(jnp.bfloat16)

    # Lane-pad the narrow (Din) input to 128 lanes; W1's rows are padded to
    # match inside _pack_params, so the result is unchanged.
    x_pad = jnp.pad(x, ((0, 0), (0, _LANES - f)))

    w_slab, v_slab = _pack_params(params)

    # VMEM budget: true footprint (+ intermediates) with headroom, capped at
    # 48 MiB so it fits a v7x TensorCore's 64 MiB physical VMEM.
    footprint = (adj.size * 2 + x_pad.size * 4 + w_slab.size * 2 +
                 v_slab.size * 4 + pool.size * 2 + g_pad * _LANES * 4 +
                 6 * n * _LANES * 4)
    vmem_limit = int(min(48 << 20, max(16 << 20, 2 * footprint)))

    vmem = pl.BlockSpec(memory_space=pltpu.MemorySpace.VMEM)
    out = pl.pallas_call(
        _fused_gin_kernel,
        out_shape=jax.ShapeDtypeStruct((g_pad, _LANES), jnp.float32),
        in_specs=[vmem] * 5,
        out_specs=vmem,
        compiler_params=pltpu.CompilerParams(vmem_limit_bytes=vmem_limit),
        cost_estimate=_cost_estimate(n, g_pad),
    )(adj, x_pad, w_slab, v_slab, pool)

    return out[:num_graphs, 0]                 # .squeeze(1)


# ---------------------------------------------------------------------------
# Parameter init (mimics the PyTorch module's shapes; Linears stored [in,out])
# ---------------------------------------------------------------------------
def init_params(key, num_features):
    dims = [(num_features, 32), (32, 64), (64, 128)]
    params = {}
    keys = jax.random.split(key, 16)
    ki = 0

    def linear(k, fan_in, fan_out):
        bound = 1.0 / jnp.sqrt(jnp.float32(fan_in))
        kw, kb = jax.random.split(k)
        w = jax.random.uniform(kw, (fan_in, fan_out), jnp.float32, -bound, bound)
        b = jax.random.uniform(kb, (1, fan_out), jnp.float32, -bound, bound)
        return w, b

    for li, (din, h) in enumerate(dims, start=1):
        w1, b1 = linear(keys[ki], din, h); ki += 1
        w2, b2 = linear(keys[ki], h, h); ki += 1
        gamma = jnp.ones((1, h), jnp.float32)
        beta = jnp.zeros((1, h), jnp.float32)
        params[f"conv{li}"] = (w1, b1, w2, b2, gamma, beta)

    w3, b3 = linear(keys[ki], 128, 64); ki += 1
    w4, b4 = linear(keys[ki], 64, 1); ki += 1
    params["mlp"] = (w3, b3, w4, b4)
    return params


# ---------------------------------------------------------------------------
# Main
# ---------------------------------------------------------------------------
if __name__ == "__main__":
    key = jax.random.PRNGKey(0)
    k_param, k_x, k_edge = jax.random.split(key, 3)

    num_features = 8
    num_nodes = 16
    num_edges = 32
    num_graphs = 2

    params = init_params(k_param, num_features)

    x = jax.random.normal(k_x, (num_nodes, num_features), jnp.float32)
    edge_index = jax.random.randint(k_edge, (2, num_edges), 0, num_nodes,
                                    dtype=jnp.int32)
    # First half of the nodes -> graph 0, second half -> graph 1.
    batch = jnp.concatenate([
        jnp.zeros((num_nodes // 2,), jnp.int32),
        jnp.ones((num_nodes - num_nodes // 2,), jnp.int32),
    ])

    fwd = jax.jit(functools.partial(my_gin_forward, num_graphs=num_graphs))
    out = fwd(params, x, edge_index, batch)
    jax.block_until_ready(out)

    assert out.shape == (num_graphs,)
    assert jnp.all(jnp.isfinite(out))
    print("KERNEL_OK")
</pallas_src>

<mosaic_0001>
module attributes {stable_mosaic.version = 11 : i64} {
  func.func private @main(%arg0: i32) attributes {dimension_semantics = [#tpu.dimension_semantics<core_parallel>], iteration_bounds = array<i64: 2>, tpu.core_type = #tpu.core_type<sc_scalar_subcore>, window_params = []} {
    return
  }
}

module attributes {stable_mosaic.version = 11 : i64} {
  func.func private @main(%arg0: i32) attributes {dimension_semantics = [#tpu.dimension_semantics<core_parallel>], iteration_bounds = array<i64: 2>, tpu.core_type = #tpu.core_type<sc_scalar_subcore>, window_params = []} {
    return
  }
}

module attributes {stable_mosaic.version = 11 : i64} {
  func.func @_fused_gin_kernel(%arg0: memref<16x16xbf16, #tpu.memory_space<vmem>>, %arg1: memref<16x128xf32, #tpu.memory_space<vmem>>, %arg2: memref<8x128x128xbf16, #tpu.memory_space<vmem>>, %arg3: memref<16x128xf32, #tpu.memory_space<vmem>>, %arg4: memref<8x16xbf16, #tpu.memory_space<vmem>>, %arg5: memref<8x128xf32, #tpu.memory_space<vmem>>) attributes {dimension_semantics = [], scalar_prefetch = 0 : i64, scratch_operands = 0 : i64, tpu.core_type = #tpu.core_type<tc>} {
    %c0 = arith.constant 0 : index
    %c0_0 = arith.constant 0 : index
    %0 = vector.load %arg0[%c0, %c0_0] : memref<16x16xbf16, #tpu.memory_space<vmem>>, vector<16x16xbf16>
    %c0_1 = arith.constant 0 : index
    %c0_2 = arith.constant 0 : index
    %1 = vector.load %arg1[%c0_1, %c0_2] : memref<16x128xf32, #tpu.memory_space<vmem>>, vector<16x128xf32>
    %c0_3 = arith.constant 0 : index
    %c0_4 = arith.constant 0 : index
    %c0_5 = arith.constant 0 : index
    %2 = vector.load %arg2[%c0_3, %c0_4, %c0_5] : memref<8x128x128xbf16, #tpu.memory_space<vmem>>, vector<1x128x128xbf16>
    %3 = vector.shape_cast %2 : vector<1x128x128xbf16> to vector<128x128xbf16>
    %c1 = arith.constant 1 : index
    %c0_6 = arith.constant 0 : index
    %c0_7 = arith.constant 0 : index
    %4 = vector.load %arg2[%c1, %c0_6, %c0_7] : memref<8x128x128xbf16, #tpu.memory_space<vmem>>, vector<1x128x128xbf16>
    %5 = vector.shape_cast %4 : vector<1x128x128xbf16> to vector<128x128xbf16>
    %c0_8 = arith.constant 0 : index
    %c0_9 = arith.constant 0 : index
    %6 = vector.load %arg3[%c0_8, %c0_9] : memref<16x128xf32, #tpu.memory_space<vmem>>, vector<1x128xf32>
    %c1_10 = arith.constant 1 : index
    %c0_11 = arith.constant 0 : index
    %7 = vector.load %arg3[%c1_10, %c0_11] : memref<16x128xf32, #tpu.memory_space<vmem>>, vector<1x128xf32>
    %c2 = arith.constant 2 : index
    %c0_12 = arith.constant 0 : index
    %8 = vector.load %arg3[%c2, %c0_12] : memref<16x128xf32, #tpu.memory_space<vmem>>, vector<1x128xf32>
    %c3 = arith.constant 3 : index
    %c0_13 = arith.constant 0 : index
    %9 = vector.load %arg3[%c3, %c0_13] : memref<16x128xf32, #tpu.memory_space<vmem>>, vector<1x128xf32>
    %10 = arith.truncf %1 : vector<16x128xf32> to vector<16x128xbf16>
    %cst = arith.constant dense<0.000000e+00> : vector<16x128xf32>
    %11 = tpu.matmul %0, %10, %cst {dimension_numbers = #tpu.dot_dimension_numbers<[1], [0], [0], [1], [0, 0, 1, 1], [], []>} : vector<16x16xbf16>, vector<16x128xbf16>, vector<16x128xf32> -> vector<16x128xf32>
    %12 = arith.addf %1, %11 : vector<16x128xf32>
    %13 = arith.truncf %12 : vector<16x128xf32> to vector<16x128xbf16>
    %cst_14 = arith.constant dense<0.000000e+00> : vector<16x128xf32>
    %14 = tpu.matmul %13, %3, %cst_14 {dimension_numbers = #tpu.dot_dimension_numbers<[1], [0], [0], [1], [0, 0, 1, 1], [], []>} : vector<16x128xbf16>, vector<128x128xbf16>, vector<16x128xf32> -> vector<16x128xf32>
    %15 = vector.broadcast %6 : vector<1x128xf32> to vector<16x128xf32>
    %16 = arith.addf %14, %15 : vector<16x128xf32>
    %cst_15 = arith.constant 0.000000e+00 : f32
    %17 = vector.broadcast %cst_15 : f32 to vector<16x128xf32>
    %18 = arith.maximumf %16, %17 : vector<16x128xf32>
    %19 = arith.truncf %18 : vector<16x128xf32> to vector<16x128xbf16>
    %cst_16 = arith.constant dense<0.000000e+00> : vector<16x128xf32>
    %20 = tpu.matmul %19, %5, %cst_16 {dimension_numbers = #tpu.dot_dimension_numbers<[1], [0], [0], [1], [0, 0, 1, 1], [], []>} : vector<16x128xbf16>, vector<128x128xbf16>, vector<16x128xf32> -> vector<16x128xf32>
    %21 = vector.broadcast %7 : vector<1x128xf32> to vector<16x128xf32>
    %22 = arith.addf %20, %21 : vector<16x128xf32>
    %cst_17 = arith.constant dense<0.000000e+00> : vector<128xf32>
    %23 = vector.multi_reduction <add>, %22, %cst_17 [0] : vector<16x128xf32> to vector<128xf32>
    %24 = vector.shape_cast %23 : vector<128xf32> to vector<1x128xf32>
    %cst_18 = arith.constant 6.250000e-02 : f32
    %25 = vector.broadcast %cst_18 : f32 to vector<1x128xf32>
    %26 = arith.mulf %24, %25 : vector<1x128xf32>
    %27 = vector.broadcast %26 : vector<1x128xf32> to vector<16x128xf32>
    %28 = arith.subf %22, %27 : vector<16x128xf32>
    %29 = arith.mulf %28, %28 : vector<16x128xf32>
    %cst_19 = arith.constant dense<0.000000e+00> : vector<128xf32>
    %30 = vector.multi_reduction <add>, %29, %cst_19 [0] : vector<16x128xf32> to vector<128xf32>
    %31 = vector.shape_cast %30 : vector<128xf32> to vector<1x128xf32>
    %cst_20 = arith.constant 6.250000e-02 : f32
    %32 = vector.broadcast %cst_20 : f32 to vector<1x128xf32>
    %33 = arith.mulf %31, %32 : vector<1x128xf32>
    %cst_21 = arith.constant 9.99999974E-6 : f32
    %34 = vector.broadcast %cst_21 : f32 to vector<1x128xf32>
    %35 = arith.addf %33, %34 : vector<1x128xf32>
    %36 = math.rsqrt %35 : vector<1x128xf32>
    %37 = arith.mulf %8, %36 : vector<1x128xf32>
    %38 = vector.broadcast %37 : vector<1x128xf32> to vector<16x128xf32>
    %39 = arith.mulf %28, %38 : vector<16x128xf32>
    %40 = vector.broadcast %9 : vector<1x128xf32> to vector<16x128xf32>
    %41 = arith.addf %39, %40 : vector<16x128xf32>
    %cst_22 = arith.constant 0.000000e+00 : f32
    %42 = vector.broadcast %cst_22 : f32 to vector<16x128xf32>
    %43 = arith.maximumf %41, %42 : vector<16x128xf32>
    %c2_23 = arith.constant 2 : index
    %c0_24 = arith.constant 0 : index
    %c0_25 = arith.constant 0 : index
    %44 = vector.load %arg2[%c2_23, %c0_24, %c0_25] : memref<8x128x128xbf16, #tpu.memory_space<vmem>>, vector<1x128x128xbf16>
    %45 = vector.shape_cast %44 : vector<1x128x128xbf16> to vector<128x128xbf16>
    %c3_26 = arith.constant 3 : index
    %c0_27 = arith.constant 0 : index
    %c0_28 = arith.constant 0 : index
    %46 = vector.load %arg2[%c3_26, %c0_27, %c0_28] : memref<8x128x128xbf16, #tpu.memory_space<vmem>>, vector<1x128x128xbf16>
    %47 = vector.shape_cast %46 : vector<1x128x128xbf16> to vector<128x128xbf16>
    %c4 = arith.constant 4 : index
    %c0_29 = arith.constant 0 : index
    %48 = vector.load %arg3[%c4, %c0_29] : memref<16x128xf32, #tpu.memory_space<vmem>>, vector<1x128xf32>
    %c5 = arith.constant 5 : index
    %c0_30 = arith.constant 0 : index
    %49 = vector.load %arg3[%c5, %c0_30] : memref<16x128xf32, #tpu.memory_space<vmem>>, vector<1x128xf32>
    %c6 = arith.constant 6 : index
    %c0_31 = arith.constant 0 : index
    %50 = vector.load %arg3[%c6, %c0_31] : memref<16x128xf32, #tpu.memory_space<vmem>>, vector<1x128xf32>
    %c7 = arith.constant 7 : index
    %c0_32 = arith.constant 0 : index
    %51 = vector.load %arg3[%c7, %c0_32] : memref<16x128xf32, #tpu.memory_space<vmem>>, vector<1x128xf32>
    %52 = arith.truncf %43 : vector<16x128xf32> to vector<16x128xbf16>
    %cst_33 = arith.constant dense<0.000000e+00> : vector<16x128xf32>
    %53 = tpu.matmul %0, %52, %cst_33 {dimension_numbers = #tpu.dot_dimension_numbers<[1], [0], [0], [1], [0, 0, 1, 1], [], []>} : vector<16x16xbf16>, vector<16x128xbf16>, vector<16x128xf32> -> vector<16x128xf32>
    %54 = arith.addf %43, %53 : vector<16x128xf32>
    %55 = arith.truncf %54 : vector<16x128xf32> to vector<16x128xbf16>
    %cst_34 = arith.constant dense<0.000000e+00> : vector<16x128xf32>
    %56 = tpu.matmul %55, %45, %cst_34 {dimension_numbers = #tpu.dot_dimension_numbers<[1], [0], [0], [1], [0, 0, 1, 1], [], []>} : vector<16x128xbf16>, vector<128x128xbf16>, vector<16x128xf32> -> vector<16x128xf32>
    %57 = vector.broadcast %48 : vector<1x128xf32> to vector<16x128xf32>
    %58 = arith.addf %56, %57 : vector<16x128xf32>
    %cst_35 = arith.constant 0.000000e+00 : f32
    %59 = vector.broadcast %cst_35 : f32 to vector<16x128xf32>
    %60 = arith.maximumf %58, %59 : vector<16x128xf32>
    %61 = arith.truncf %60 : vector<16x128xf32> to vector<16x128xbf16>
    %cst_36 = arith.constant dense<0.000000e+00> : vector<16x128xf32>
    %62 = tpu.matmul %61, %47, %cst_36 {dimension_numbers = #tpu.dot_dimension_numbers<[1], [0], [0], [1], [0, 0, 1, 1], [], []>} : vector<16x128xbf16>, vector<128x128xbf16>, vector<16x128xf32> -> vector<16x128xf32>
    %63 = vector.broadcast %49 : vector<1x128xf32> to vector<16x128xf32>
    %64 = arith.addf %62, %63 : vector<16x128xf32>
    %cst_37 = arith.constant dense<0.000000e+00> : vector<128xf32>
    %65 = vector.multi_reduction <add>, %64, %cst_37 [0] : vector<16x128xf32> to vector<128xf32>
    %66 = vector.shape_cast %65 : vector<128xf32> to vector<1x128xf32>
    %cst_38 = arith.constant 6.250000e-02 : f32
    %67 = vector.broadcast %cst_38 : f32 to vector<1x128xf32>
    %68 = arith.mulf %66, %67 : vector<1x128xf32>
    %69 = vector.broadcast %68 : vector<1x128xf32> to vector<16x128xf32>
    %70 = arith.subf %64, %69 : vector<16x128xf32>
    %71 = arith.mulf %70, %70 : vector<16x128xf32>
    %cst_39 = arith.constant dense<0.000000e+00> : vector<128xf32>
    %72 = vector.multi_reduction <add>, %71, %cst_39 [0] : vector<16x128xf32> to vector<128xf32>
    %73 = vector.shape_cast %72 : vector<128xf32> to vector<1x128xf32>
    %cst_40 = arith.constant 6.250000e-02 : f32
    %74 = vector.broadcast %cst_40 : f32 to vector<1x128xf32>
    %75 = arith.mulf %73, %74 : vector<1x128xf32>
    %cst_41 = arith.constant 9.99999974E-6 : f32
    %76 = vector.broadcast %cst_41 : f32 to vector<1x128xf32>
    %77 = arith.addf %75, %76 : vector<1x128xf32>
    %78 = math.rsqrt %77 : vector<1x128xf32>
    %79 = arith.mulf %50, %78 : vector<1x128xf32>
    %80 = vector.broadcast %79 : vector<1x128xf32> to vector<16x128xf32>
    %81 = arith.mulf %70, %80 : vector<16x128xf32>
    %82 = vector.broadcast %51 : vector<1x128xf32> to vector<16x128xf32>
    %83 = arith.addf %81, %82 : vector<16x128xf32>
    %cst_42 = arith.constant 0.000000e+00 : f32
    %84 = vector.broadcast %cst_42 : f32 to vector<16x128xf32>
    %85 = arith.maximumf %83, %84 : vector<16x128xf32>
    %c4_43 = arith.constant 4 : index
    %c0_44 = arith.constant 0 : index
    %c0_45 = arith.constant 0 : index
    %86 = vector.load %arg2[%c4_43, %c0_44, %c0_45] : memref<8x128x128xbf16, #tpu.memory_space<vmem>>, vector<1x128x128xbf16>
    %87 = vector.shape_cast %86 : vector<1x128x128xbf16> to vector<128x128xbf16>
    %c5_46 = arith.constant 5 : index
    %c0_47 = arith.constant 0 : index
    %c0_48 = arith.constant 0 : index
    %88 = vector.load %arg2[%c5_46, %c0_47, %c0_48] : memref<8x128x128xbf16, #tpu.memory_space<vmem>>, vector<1x128x128xbf16>
    %89 = vector.shape_cast %88 : vector<1x128x128xbf16> to vector<128x128xbf16>
    %c8 = arith.constant 8 : index
    %c0_49 = arith.constant 0 : index
    %90 = vector.load %arg3[%c8, %c0_49] : memref<16x128xf32, #tpu.memory_space<vmem>>, vector<1x128xf32>
    %c9 = arith.constant 9 : index
    %c0_50 = arith.constant 0 : index
    %91 = vector.load %arg3[%c9, %c0_50] : memref<16x128xf32, #tpu.memory_space<vmem>>, vector<1x128xf32>
    %c10 = arith.constant 10 : index
    %c0_51 = arith.constant 0 : index
    %92 = vector.load %arg3[%c10, %c0_51] : memref<16x128xf32, #tpu.memory_space<vmem>>, vector<1x128xf32>
    %c11 = arith.constant 11 : index
    %c0_52 = arith.constant 0 : index
    %93 = vector.load %arg3[%c11, %c0_52] : memref<16x128xf32, #tpu.memory_space<vmem>>, vector<1x128xf32>
    %94 = arith.truncf %85 : vector<16x128xf32> to vector<16x128xbf16>
    %cst_53 = arith.constant dense<0.000000e+00> : vector<16x128xf32>
    %95 = tpu.matmul %0, %94, %cst_53 {dimension_numbers = #tpu.dot_dimension_numbers<[1], [0], [0], [1], [0, 0, 1, 1], [], []>} : vector<16x16xbf16>, vector<16x128xbf16>, vector<16x128xf32> -> vector<16x128xf32>
    %96 = arith.addf %85, %95 : vector<16x128xf32>
    %97 = arith.truncf %96 : vector<16x128xf32> to vector<16x128xbf16>
    %cst_54 = arith.constant dense<0.000000e+00> : vector<16x128xf32>
    %98 = tpu.matmul %97, %87, %cst_54 {dimension_numbers = #tpu.dot_dimension_numbers<[1], [0], [0], [1], [0, 0, 1, 1], [], []>} : vector<16x128xbf16>, vector<128x128xbf16>, vector<16x128xf32> -> vector<16x128xf32>
    %99 = vector.broadcast %90 : vector<1x128xf32> to vector<16x128xf32>
    %100 = arith.addf %98, %99 : vector<16x128xf32>
    %cst_55 = arith.constant 0.000000e+00 : f32
    %101 = vector.broadcast %cst_55 : f32 to vector<16x128xf32>
    %102 = arith.maximumf %100, %101 : vector<16x128xf32>
    %103 = arith.truncf %102 : vector<16x128xf32> to vector<16x128xbf16>
    %cst_56 = arith.constant dense<0.000000e+00> : vector<16x128xf32>
    %104 = tpu.matmul %103, %89, %cst_56 {dimension_numbers = #tpu.dot_dimension_numbers<[1], [0], [0], [1], [0, 0, 1, 1], [], []>} : vector<16x128xbf16>, vector<128x128xbf16>, vector<16x128xf32> -> vector<16x128xf32>
    %105 = vector.broadcast %91 : vector<1x128xf32> to vector<16x128xf32>
    %106 = arith.addf %104, %105 : vector<16x128xf32>
    %cst_57 = arith.constant dense<0.000000e+00> : vector<128xf32>
    %107 = vector.multi_reduction <add>, %106, %cst_57 [0] : vector<16x128xf32> to vector<128xf32>
    %108 = vector.shape_cast %107 : vector<128xf32> to vector<1x128xf32>
    %cst_58 = arith.constant 6.250000e-02 : f32
    %109 = vector.broadcast %cst_58 : f32 to vector<1x128xf32>
    %110 = arith.mulf %108, %109 : vector<1x128xf32>
    %111 = vector.broadcast %110 : vector<1x128xf32> to vector<16x128xf32>
    %112 = arith.subf %106, %111 : vector<16x128xf32>
    %113 = arith.mulf %112, %112 : vector<16x128xf32>
    %cst_59 = arith.constant dense<0.000000e+00> : vector<128xf32>
    %114 = vector.multi_reduction <add>, %113, %cst_59 [0] : vector<16x128xf32> to vector<128xf32>
    %115 = vector.shape_cast %114 : vector<128xf32> to vector<1x128xf32>
    %cst_60 = arith.constant 6.250000e-02 : f32
    %116 = vector.broadcast %cst_60 : f32 to vector<1x128xf32>
    %117 = arith.mulf %115, %116 : vector<1x128xf32>
    %cst_61 = arith.constant 9.99999974E-6 : f32
    %118 = vector.broadcast %cst_61 : f32 to vector<1x128xf32>
    %119 = arith.addf %117, %118 : vector<1x128xf32>
    %120 = math.rsqrt %119 : vector<1x128xf32>
    %121 = arith.mulf %92, %120 : vector<1x128xf32>
    %122 = vector.broadcast %121 : vector<1x128xf32> to vector<16x128xf32>
    %123 = arith.mulf %112, %122 : vector<16x128xf32>
    %124 = vector.broadcast %93 : vector<1x128xf32> to vector<16x128xf32>
    %125 = arith.addf %123, %124 : vector<16x128xf32>
    %cst_62 = arith.constant 0.000000e+00 : f32
    %126 = vector.broadcast %cst_62 : f32 to vector<16x128xf32>
    %127 = arith.maximumf %125, %126 : vector<16x128xf32>
    %c0_63 = arith.constant 0 : index
    %c0_64 = arith.constant 0 : index
    %128 = vector.load %arg4[%c0_63, %c0_64] : memref<8x16xbf16, #tpu.memory_space<vmem>>, vector<8x16xbf16>
    %129 = arith.truncf %127 : vector<16x128xf32> to vector<16x128xbf16>
    %cst_65 = arith.constant dense<0.000000e+00> : vector<8x128xf32>
    %130 = tpu.matmul %128, %129, %cst_65 {dimension_numbers = #tpu.dot_dimension_numbers<[1], [0], [0], [1], [0, 0, 1, 1], [], []>} : vector<8x16xbf16>, vector<16x128xbf16>, vector<8x128xf32> -> vector<8x128xf32>
    %131 = arith.truncf %130 : vector<8x128xf32> to vector<8x128xbf16>
    %c6_66 = arith.constant 6 : index
    %c0_67 = arith.constant 0 : index
    %c0_68 = arith.constant 0 : index
    %132 = vector.load %arg2[%c6_66, %c0_67, %c0_68] : memref<8x128x128xbf16, #tpu.memory_space<vmem>>, vector<1x128x128xbf16>
    %133 = vector.shape_cast %132 : vector<1x128x128xbf16> to vector<128x128xbf16>
    %cst_69 = arith.constant dense<0.000000e+00> : vector<8x128xf32>
    %134 = tpu.matmul %131, %133, %cst_69 {dimension_numbers = #tpu.dot_dimension_numbers<[1], [0], [0], [1], [0, 0, 1, 1], [], []>} : vector<8x128xbf16>, vector<128x128xbf16>, vector<8x128xf32> -> vector<8x128xf32>
    %c12 = arith.constant 12 : index
    %c0_70 = arith.constant 0 : index
    %135 = vector.load %arg3[%c12, %c0_70] : memref<16x128xf32, #tpu.memory_space<vmem>>, vector<1x128xf32>
    %136 = vector.broadcast %135 : vector<1x128xf32> to vector<8x128xf32>
    %137 = arith.addf %134, %136 : vector<8x128xf32>
    %cst_71 = arith.constant 0.000000e+00 : f32
    %138 = vector.broadcast %cst_71 : f32 to vector<8x128xf32>
    %139 = arith.maximumf %137, %138 : vector<8x128xf32>
    %140 = arith.truncf %139 : vector<8x128xf32> to vector<8x128xbf16>
    %c7_72 = arith.constant 7 : index
    %c0_73 = arith.constant 0 : index
    %c0_74 = arith.constant 0 : index
    %141 = vector.load %arg2[%c7_72, %c0_73, %c0_74] : memref<8x128x128xbf16, #tpu.memory_space<vmem>>, vector<1x128x128xbf16>
    %142 = vector.shape_cast %141 : vector<1x128x128xbf16> to vector<128x128xbf16>
    %cst_75 = arith.constant dense<0.000000e+00> : vector<8x128xf32>
    %143 = tpu.matmul %140, %142, %cst_75 {dimension_numbers = #tpu.dot_dimension_numbers<[1], [0], [0], [1], [0, 0, 1, 1], [], []>} : vector<8x128xbf16>, vector<128x128xbf16>, vector<8x128xf32> -> vector<8x128xf32>
    %c13 = arith.constant 13 : index
    %c0_76 = arith.constant 0 : index
    %144 = vector.load %arg3[%c13, %c0_76] : memref<16x128xf32, #tpu.memory_space<vmem>>, vector<1x128xf32>
    %145 = vector.broadcast %144 : vector<1x128xf32> to vector<8x128xf32>
    %146 = arith.addf %143, %145 : vector<8x128xf32>
    %c0_77 = arith.constant 0 : index
    %c0_78 = arith.constant 0 : index
    %147 = vector.load %arg5[%c0_77, %c0_78] : memref<8x128xf32, #tpu.memory_space<vmem>>, vector<8x128xf32>
    tpu.vector_store %arg5[%c0_77, %c0_78], %146 {strides = array<i32>} : memref<8x128xf32, #tpu.memory_space<vmem>>, vector<8x128xf32>,
    return
  }
}

</mosaic_0001>

<llo_original>
// kernel: my_gin_forward.1
$region0: #{my_gin_forward.1}
  #allocation0 [shape = 'u32[]', space=smem, size = 0x4, offset = 0x4, fixed_abs, tag = 'smem constant byte address 0x4 - core index']
  #allocation1 [shape = 'u32[144,128]{1,0:T(1,128)}', space=vmem, size = 0x12000, scoped, tag = 'internal scratch']
  %s0 = inlined_call_operand.vmem [shape: bf16[16,16], index: 0, kind: input, shape index: {}]
  %s1 = inlined_call_operand.vmem [shape: f32[16,128], index: 1, kind: input, shape index: {}]
  %s2 = inlined_call_operand.vmem [shape: bf16[8,128,128], index: 2, kind: input, shape index: {}]
  %s3 = inlined_call_operand.vmem [shape: f32[16,128], index: 3, kind: input, shape index: {}]
  %s4 = inlined_call_operand.vmem [shape: bf16[8,16], index: 4, kind: input, shape index: {}]
  %s5 = inlined_call_operand.vmem [shape: f32[8,128], index: 5, kind: output, shape index: {}]
  %s6 = sld [smem:[#allocation0]]
  $region30: #{my_gin_forward.1} parent=0
    _
  %s8 = ssub.s32 1, %s6
  %s9 = scalar_select 0, %s8, %s6
  // Predicated region
  $region2: #{my_gin_forward.1} parent=0 // pred_check
    _
  $region3: #{my_gin_forward.1} parent=0 // pred_check_branch
    %11 = sbr.rel (0) target = $region5
  $region4: #{my_gin_forward.1} parent=0 // pred_region
    _
  $region5: #{my_gin_forward.1} parent=0 // pred_fallthru
    _
  // Predicated region
  $region6: #{my_gin_forward.1} parent=0 // pred_check
    _
  $region7: #{my_gin_forward.1} parent=0 // pred_check_branch
    %13 = sbr.rel (0) target = $region9
  $region8: #{my_gin_forward.1} parent=0 // pred_region
    _
  $region9: #{my_gin_forward.1} parent=0 // pred_fallthru
    _
  // Predicated region
  $region10: #{my_gin_forward.1} parent=0 // pred_check
    _
  $region11: #{my_gin_forward.1} parent=0 // pred_check_branch
    %15 = sbr.rel (0) target = $region13
  $region12: #{my_gin_forward.1} parent=0 // pred_region
    _
  $region13: #{my_gin_forward.1} parent=0 // pred_fallthru
    _
  // Predicated region
  $region14: #{my_gin_forward.1} parent=0 // pred_check
    _
  $region15: #{my_gin_forward.1} parent=0 // pred_check_branch
    %17 = sbr.rel (0) target = $region17
  $region16: #{my_gin_forward.1} parent=0 // pred_region
    _
  $region17: #{my_gin_forward.1} parent=0 // pred_fallthru
    _
  // Predicated region
  $region18: #{my_gin_forward.1} parent=0 // pred_check
    _
  $region19: #{my_gin_forward.1} parent=0 // pred_check_branch
    %19 = sbr.rel (0) target = $region21
  $region20: #{my_gin_forward.1} parent=0 // pred_region
    _
  $region21: #{my_gin_forward.1} parent=0 // pred_fallthru
    _
  %v21 = vld [vmem:[%s0] sm:$0xf]
  %v22 = vld [vmem:[%s0 + $0x4] sm:$0xf]
  %v23 = vld [vmem:[%s1] sm:$0xff]
  %v24 = vld [vmem:[%s1 + $0x8] sm:$0xff]
  %v25 = vld [vmem:[%s2] sm:$0xf]
  %v26 = vld [vmem:[%s2 + $0x4] sm:$0xf]
  %v27 = vld [vmem:[%s2 + $0x8] sm:$0xf]
  %v28 = vld [vmem:[%s2 + $0xc] sm:$0xf]
  %v29 = vld [vmem:[%s2 + $0x10] sm:$0xf]
  %v30 = vld [vmem:[%s2 + $0x14] sm:$0xf]
  %v31 = vld [vmem:[%s2 + $0x18] sm:$0xf]
  %v32 = vld [vmem:[%s2 + $0x1c] sm:$0xf]
  %v33 = vld [vmem:[%s2 + $0x20] sm:$0xf]
  %v34 = vld [vmem:[%s2 + $0x24] sm:$0xf]
  %v35 = vld [vmem:[%s2 + $0x28] sm:$0xf]
  %v36 = vld [vmem:[%s2 + $0x2c] sm:$0xf]
  %v37 = vld [vmem:[%s2 + $0x30] sm:$0xf]
  %v38 = vld [vmem:[%s2 + $0x34] sm:$0xf]
  %v39 = vld [vmem:[%s2 + $0x38] sm:$0xf]
  %v40 = vld [vmem:[%s2 + $0x3c] sm:$0xf]
  %s41 = scalar_lea.vmem %s2, 64
  %v42 = vld [vmem:[%s41] sm:$0xf]
  %v43 = vld [vmem:[%s41 + $0x4] sm:$0xf]
  %v44 = vld [vmem:[%s41 + $0x8] sm:$0xf]
  %v45 = vld [vmem:[%s41 + $0xc] sm:$0xf]
  %v46 = vld [vmem:[%s41 + $0x10] sm:$0xf]
  %v47 = vld [vmem:[%s41 + $0x14] sm:$0xf]
  %v48 = vld [vmem:[%s41 + $0x18] sm:$0xf]
  %v49 = vld [vmem:[%s41 + $0x1c] sm:$0xf]
  %v50 = vld [vmem:[%s41 + $0x20] sm:$0xf]
  %v51 = vld [vmem:[%s41 + $0x24] sm:$0xf]
  %v52 = vld [vmem:[%s41 + $0x28] sm:$0xf]
  %v53 = vld [vmem:[%s41 + $0x2c] sm:$0xf]
  %v54 = vld [vmem:[%s41 + $0x30] sm:$0xf]
  %v55 = vld [vmem:[%s41 + $0x34] sm:$0xf]
  %v56 = vld [vmem:[%s41 + $0x38] sm:$0xf]
  %v57 = vld [vmem:[%s41 + $0x3c] sm:$0xf]
  %v58 = vld [vmem:[%s3] sm:$0x1]
  %v59 = vld [vmem:[%s3 + $0x1] sm:$0x1]
  %v60 = vld [vmem:[%s3 + $0x2] sm:$0x1]
  %v61 = vld [vmem:[%s3 + $0x3] sm:$0x1]
  %v62 = vpack.c.bf16 %v24, %v23
  %v65 = vunpack.c.l.b16 %v21
  %v66 = vunpack.c.l.b16 %v22
  %v67 = vpack.c.b16 %v66, %v65
  %vm68 = vcmask 130048
  %v70 = vsel %vm68, %v67, 0
  %72 = vmatprep.subr.bf16.mxu0 0
  %73 = vmatpush1.bf16.msra.mxu0 %v62
  %74 = vmatprep.subr.bf16.mxu0 0
  %75 = vmatpush1.bf16.msra.mxu0 0
  %76 = vmatprep.subr.bf16.mxu0 0
  %77 = vmatpush1.bf16.msra.mxu0 0
  %78 = vmatprep.subr.bf16.mxu0 0
  %79 = vmatpush1.bf16.msra.mxu0 0
  %80 = vmatprep.subr.bf16.mxu0 0
  %81 = vmatpush1.bf16.msra.mxu0 0
  %82 = vmatprep.subr.bf16.mxu0 0
  %83 = vmatpush1.bf16.msra.mxu0 0
  %84 = vmatprep.subr.bf16.mxu0 0
  %85 = vmatpush1.bf16.msra.mxu0 0
  %86 = vmatprep.subr.bf16.mxu0 0
  %87 = vmatpush1.bf16.msra.mxu0 0
  %88 = vmatprep.subr.bf16.mxu0 0
  %89 = vmatpush1.bf16.msra.mxu0 0
  %90 = vmatprep.subr.bf16.mxu0 0
  %91 = vmatpush1.bf16.msra.mxu0 0
  %92 = vmatprep.subr.bf16.mxu0 0
  %93 = vmatpush1.bf16.msra.mxu0 0
  %94 = vmatprep.subr.bf16.mxu0 0
  %95 = vmatpush1.bf16.msra.mxu0 0
  %96 = vmatprep.subr.bf16.mxu0 0
  %97 = vmatpush1.bf16.msra.mxu0 0
  %98 = vmatprep.subr.bf16.mxu0 0
  %99 = vmatpush1.bf16.msra.mxu0 0
  %100 = vmatprep.subr.bf16.mxu0 0
  %101 = vmatpush1.bf16.msra.mxu0 0
  %102 = vmatprep.subr.bf16.mxu0 0
  %103 = vmatpush1.bf16.msra.mxu0 0
  %104 = vmatprep.mubr.bf16.mxu0 0
  %105 = vmatmul.mubr.bf16.gmra.mrb[0].mxu0 %v70
  %v106 = vpop.f32.mrb[0].mxu0
  %v107 = vadd.f32 0.0, %v106
  %v108 = vpop.f32.mrb[0].mxu0
  %v109 = vpop.f32.mrb[0].mxu0
  %v110 = vadd.f32 0.0, %v109
  %v111 = vpop.f32.mrb[0].mxu0
  %112 = vdwg.mxu0
  %v113 = vadd.f32 %v23, %v107
  %v114 = vadd.f32 %v24, %v110
  %v115 = vpack.c.bf16 %v114, %v113
  %v116 = vlaneseq
  %v117 = vshrl.u32 %v116, 7
  %v118 = vsub.s32 0, %v117
  %v119 = vrot.slane %v58, %v118
  %v136 = vunpack.c.l.b16 %v25
  %v137 = vunpack.c.l.b16 %v26
  %v138 = vunpack.c.l.b16 %v27
  %v139 = vunpack.c.l.b16 %v28
  %v140 = vunpack.c.l.b16 %v29
  %v141 = vunpack.c.l.b16 %v30
  %v142 = vunpack.c.l.b16 %v31
  %v143 = vunpack.c.l.b16 %v32
  %v144 = vunpack.c.l.b16 %v33
  %v145 = vunpack.c.l.b16 %v34
  %v146 = vunpack.c.l.b16 %v35
  %v147 = vunpack.c.l.b16 %v36
  %v148 = vunpack.c.l.b16 %v37
  %v149 = vunpack.c.l.b16 %v38
  %v150 = vunpack.c.l.b16 %v39
  %v151 = vunpack.c.l.b16 %v40
  %v152 = vpack.c.b16 %v137, %v136
  %v153 = vpack.c.b16 %v139, %v138
  %v154 = vpack.c.b16 %v141, %v140
  %v155 = vpack.c.b16 %v143, %v142
  %v156 = vpack.c.b16 %v145, %v144
  %v157 = vpack.c.b16 %v147, %v146
  %v158 = vpack.c.b16 %v149, %v148
  %v159 = vpack.c.b16 %v151, %v150
  %168 = vmatprep.subr.bf16.mxu0 0
  %169 = vmatpush1.bf16.msra.mxu0 %v152
  %170 = vmatprep.subr.bf16.mxu0 0
  %171 = vmatpush1.bf16.msra.mxu0 %v153
  %172 = vmatprep.subr.bf16.mxu0 0
  %173 = vmatpush1.bf16.msra.mxu0 %v154
  %174 = vmatprep.subr.bf16.mxu0 0
  %175 = vmatpush1.bf16.msra.mxu0 %v155
  %176 = vmatprep.subr.bf16.mxu0 0
  %177 = vmatpush1.bf16.msra.mxu0 %v156
  %178 = vmatprep.subr.bf16.mxu0 0
  %179 = vmatpush1.bf16.msra.mxu0 %v157
  %180 = vmatprep.subr.bf16.mxu0 0
  %181 = vmatpush1.bf16.msra.mxu0 %v158
  %182 = vmatprep.subr.bf16.mxu0 0
  %183 = vmatpush1.bf16.msra.mxu0 %v159
  %184 = vmatprep.subr.bf16.mxu0 0
  %185 = vmatpush1.bf16.msra.mxu0 0
  %186 = vmatprep.subr.bf16.mxu0 0
  %187 = vmatpush1.bf16.msra.mxu0 0
  %188 = vmatprep.subr.bf16.mxu0 0
  %189 = vmatpush1.bf16.msra.mxu0 0
  %190 = vmatprep.subr.bf16.mxu0 0
  %191 = vmatpush1.bf16.msra.mxu0 0
  %192 = vmatprep.subr.bf16.mxu0 0
  %193 = vmatpush1.bf16.msra.mxu0 0
  %194 = vmatprep.subr.bf16.mxu0 0
  %195 = vmatpush1.bf16.msra.mxu0 0
  %196 = vmatprep.subr.bf16.mxu0 0
  %197 = vmatpush1.bf16.msra.mxu0 0
  %198 = vmatprep.subr.bf16.mxu0 0
  %199 = vmatpush1.bf16.msra.mxu0 0
  %200 = vmatprep.mubr.bf16.mxu0 0
  %201 = vmatmul.mubr.bf16.gmra.mrb[0].mxu0 %v115
  %v202 = vpop.f32.mrb[0].mxu0
  %v203 = vadd.f32 %v119, %v202
  %v204 = vpop.f32.mrb[0].mxu0
  %v205 = vpop.f32.mrb[0].mxu0
  %v206 = vadd.f32 %v119, %v205
  %v207 = vpop.f32.mrb[0].mxu0
  %208 = vdwg.mxu0
  %v209 = vmax.f32 %v203, 0.0
  %v210 = vmax.f32 %v206, 0.0
  %v211 = vpack.c.bf16 %v210, %v209
  %v212 = vlaneseq
  %v213 = vshrl.u32 %v212, 7
  %v214 = vsub.s32 0, %v213
  %v215 = vrot.slane %v59, %v214
  %v232 = vunpack.c.l.b16 %v42
  %v233 = vunpack.c.l.b16 %v43
  %v234 = vunpack.c.l.b16 %v44
  %v235 = vunpack.c.l.b16 %v45
  %v236 = vunpack.c.l.b16 %v46
  %v237 = vunpack.c.l.b16 %v47
  %v238 = vunpack.c.l.b16 %v48
  %v239 = vunpack.c.l.b16 %v49
  %v240 = vunpack.c.l.b16 %v50
  %v241 = vunpack.c.l.b16 %v51
  %v242 = vunpack.c.l.b16 %v52
  %v243 = vunpack.c.l.b16 %v53
  %v244 = vunpack.c.l.b16 %v54
  %v245 = vunpack.c.l.b16 %v55
  %v246 = vunpack.c.l.b16 %v56
  %v247 = vunpack.c.l.b16 %v57
  %v248 = vpack.c.b16 %v233, %v232
  %v249 = vpack.c.b16 %v235, %v234
  %v250 = vpack.c.b16 %v237, %v236
  %v251 = vpack.c.b16 %v239, %v238
  %v252 = vpack.c.b16 %v241, %v240
  %v253 = vpack.c.b16 %v243, %v242
  %v254 = vpack.c.b16 %v245, %v244
  %v255 = vpack.c.b16 %v247, %v246
  %264 = vmatprep.subr.bf16.mxu0 0
  %265 = vmatpush1.bf16.msra.mxu0 %v248
  %266 = vmatprep.subr.bf16.mxu0 0
  %267 = vmatpush1.bf16.msra.mxu0 %v249
  %268 = vmatprep.subr.bf16.mxu0 0
  %269 = vmatpush1.bf16.msra.mxu0 %v250
  %270 = vmatprep.subr.bf16.mxu0 0
  %271 = vmatpush1.bf16.msra.mxu0 %v251
  %272 = vmatprep.subr.bf16.mxu0 0
  %273 = vmatpush1.bf16.msra.mxu0 %v252
  %274 = vmatprep.subr.bf16.mxu0 0
  %275 = vmatpush1.bf16.msra.mxu0 %v253
  %276 = vmatprep.subr.bf16.mxu0 0
  %277 = vmatpush1.bf16.msra.mxu0 %v254
  %278 = vmatprep.subr.bf16.mxu0 0
  %279 = vmatpush1.bf16.msra.mxu0 %v255
  %280 = vmatprep.subr.bf16.mxu0 0
  %281 = vmatpush1.bf16.msra.mxu0 0
  %282 = vmatprep.subr.bf16.mxu0 0
  %283 = vmatpush1.bf16.msra.mxu0 0
  %284 = vmatprep.subr.bf16.mxu0 0
  %285 = vmatpush1.bf16.msra.mxu0 0
  %286 = vmatprep.subr.bf16.mxu0 0
  %287 = vmatpush1.bf16.msra.mxu0 0
  %288 = vmatprep.subr.bf16.mxu0 0
  %289 = vmatpush1.bf16.msra.mxu0 0
  %290 = vmatprep.subr.bf16.mxu0 0
  %291 = vmatpush1.bf16.msra.mxu0 0
  %292 = vmatprep.subr.bf16.mxu0 0
  %293 = vmatpush1.bf16.msra.mxu0 0
  %294 = vmatprep.subr.bf16.mxu0 0
  %295 = vmatpush1.bf16.msra.mxu0 0
  %296 = vmatprep.mubr.bf16.mxu0 0
  %297 = vmatmul.mubr.bf16.gmra.mrb[0].mxu0 %v211
  %v298 = vpop.f32.mrb[0].mxu0
  %v299 = vadd.f32 %v215, %v298
  %v300 = vpop.f32.mrb[0].mxu0
  %v301 = vpop.f32.mrb[0].mxu0
  %v302 = vadd.f32 %v215, %v301
  %v303 = vpop.f32.mrb[0].mxu0
  %304 = vdwg.mxu0
  %v305 = vadd.f32 %v299, %v302
  %v306 = vrot.slane %v305, 4
  %v307 = vadd.f32 %v305, %v306
  %v308 = vrot.slane %v307, 2
  %v309 = vadd.f32 %v307, %v308
  %v310 = vrot.slane %v309, 1
  %v311 = vadd.f32 %v309, %v310
  %v312 = vmul.f32 %v311, 0.0625
  %v313 = vsub.f32 %v299, %v312
  %v314 = vsub.f32 %v302, %v312
  %v315 = vmul.f32 %v313, %v313
  %v316 = vmul.f32 %v314, %v314
  %v317 = vadd.f32 %v315, %v316
  %v318 = vrot.slane %v317, 4
  %v319 = vadd.f32 %v317, %v318
  %v320 = vrot.slane %v319, 2
  %v321 = vadd.f32 %v319, %v320
  %v322 = vrot.slane %v321, 1
  %v323 = vadd.f32 %v321, %v322
  %v324 = vmul.f32 %v323, 0.0625
  %v325 = vadd.f32 %v324, 1e-05
  %v326 = vrsqrt.pop %v325
  %v327 = vmul.f32 %v60, %v326
  %v328 = vlaneseq
  %v329 = vshrl.u32 %v328, 7
  %v330 = vsub.s32 0, %v329
  %v331 = vrot.slane %v327, %v330
  %v332 = vmul.f32 %v313, %v331
  %v333 = vmul.f32 %v314, %v331
  %v334 = vlaneseq
  %v335 = vshrl.u32 %v334, 7
  %v336 = vsub.s32 0, %v335
  %v337 = vrot.slane %v61, %v336
  %v338 = vadd.f32 %v332, %v337
  %v339 = vadd.f32 %v333, %v337
  %v340 = vmax.f32 %v338, 0.0
  %v341 = vmax.f32 %v339, 0.0
  %s342 = scalar_lea.vmem %s2, 128
  %v343 = vld [vmem:[%s342] sm:$0xf]
  %v344 = vld [vmem:[%s342 + $0x4] sm:$0xf]
  %v345 = vld [vmem:[%s342 + $0x8] sm:$0xf]
  %v346 = vld [vmem:[%s342 + $0xc] sm:$0xf]
  %v347 = vld [vmem:[%s342 + $0x10] sm:$0xf]
  %v348 = vld [vmem:[%s342 + $0x14] sm:$0xf]
  %v349 = vld [vmem:[%s342 + $0x18] sm:$0xf]
  %v350 = vld [vmem:[%s342 + $0x1c] sm:$0xf]
  %v351 = vld [vmem:[%s342 + $0x20] sm:$0xf]
  %v352 = vld [vmem:[%s342 + $0x24] sm:$0xf]
  %v353 = vld [vmem:[%s342 + $0x28] sm:$0xf]
  %v354 = vld [vmem:[%s342 + $0x2c] sm:$0xf]
  %v355 = vld [vmem:[%s342 + $0x30] sm:$0xf]
  %v356 = vld [vmem:[%s342 + $0x34] sm:$0xf]
  %v357 = vld [vmem:[%s342 + $0x38] sm:$0xf]
  %v358 = vld [vmem:[%s342 + $0x3c] sm:$0xf]
  %s359 = scalar_lea.vmem %s2, 192
  %v360 = vld [vmem:[%s359] sm:$0xf]
  %v361 = vld [vmem:[%s359 + $0x4] sm:$0xf]
  %v362 = vld [vmem:[%s359 + $0x8] sm:$0xf]
  %v363 = vld [vmem:[%s359 + $0xc] sm:$0xf]
  %v364 = vld [vmem:[%s359 + $0x10] sm:$0xf]
  %v365 = vld [vmem:[%s359 + $0x14] sm:$0xf]
  %v366 = vld [vmem:[%s359 + $0x18] sm:$0xf]
  %v367 = vld [vmem:[%s359 + $0x1c] sm:$0xf]
  %v368 = vld [vmem:[%s359 + $0x20] sm:$0xf]
  %v369 = vld [vmem:[%s359 + $0x24] sm:$0xf]
  %v370 = vld [vmem:[%s359 + $0x28] sm:$0xf]
  %v371 = vld [vmem:[%s359 + $0x2c] sm:$0xf]
  %v372 = vld [vmem:[%s359 + $0x30] sm:$0xf]
  %v373 = vld [vmem:[%s359 + $0x34] sm:$0xf]
  %v374 = vld [vmem:[%s359 + $0x38] sm:$0xf]
  %v375 = vld [vmem:[%s359 + $0x3c] sm:$0xf]
  %v376 = vld [vmem:[%s3 + $0x4] sm:$0x1]
  %v377 = vld [vmem:[%s3 + $0x5] sm:$0x1]
  %v378 = vld [vmem:[%s3 + $0x6] sm:$0x1]
  %v379 = vld [vmem:[%s3 + $0x7] sm:$0x1]
  %v380 = vpack.c.bf16 %v341, %v340
  %381 = vmatprep.subr.bf16.mxu0 0
  %382 = vmatpush1.bf16.msra.mxu0 %v380
  %383 = vmatprep.subr.bf16.mxu0 0
  %384 = vmatpush1.bf16.msra.mxu0 0
  %385 = vmatprep.subr.bf16.mxu0 0
  %386 = vmatpush1.bf16.msra.mxu0 0
  %387 = vmatprep.subr.bf16.mxu0 0
  %388 = vmatpush1.bf16.msra.mxu0 0
  %389 = vmatprep.subr.bf16.mxu0 0
  %390 = vmatpush1.bf16.msra.mxu0 0
  %391 = vmatprep.subr.bf16.mxu0 0
  %392 = vmatpush1.bf16.msra.mxu0 0
  %393 = vmatprep.subr.bf16.mxu0 0
  %394 = vmatpush1.bf16.msra.mxu0 0
  %395 = vmatprep.subr.bf16.mxu0 0
  %396 = vmatpush1.bf16.msra.mxu0 0
  %397 = vmatprep.subr.bf16.mxu0 0
  %398 = vmatpush1.bf16.msra.mxu0 0
  %399 = vmatprep.subr.bf16.mxu0 0
  %400 = vmatpush1.bf16.msra.mxu0 0
  %401 = vmatprep.subr.bf16.mxu0 0
  %402 = vmatpush1.bf16.msra.mxu0 0
  %403 = vmatprep.subr.bf16.mxu0 0
  %404 = vmatpush1.bf16.msra.mxu0 0
  %405 = vmatprep.subr.bf16.mxu0 0
  %406 = vmatpush1.bf16.msra.mxu0 0
  %407 = vmatprep.subr.bf16.mxu0 0
  %408 = vmatpush1.bf16.msra.mxu0 0
  %409 = vmatprep.subr.bf16.mxu0 0
  %410 = vmatpush1.bf16.msra.mxu0 0
  %411 = vmatprep.subr.bf16.mxu0 0
  %412 = vmatpush1.bf16.msra.mxu0 0
  %413 = vmatprep.mubr.bf16.mxu0 0
  %414 = vmatmul.mubr.bf16.gmra.mrb[0].mxu0 %v70
  %v415 = vpop.f32.mrb[0].mxu0
  %v416 = vadd.f32 0.0, %v415
  %v417 = vpop.f32.mrb[0].mxu0
  %v418 = vpop.f32.mrb[0].mxu0
  %v419 = vadd.f32 0.0, %v418
  %v420 = vpop.f32.mrb[0].mxu0
  %421 = vdwg.mxu0
  %v422 = vadd.f32 %v340, %v416
  %v423 = vadd.f32 %v341, %v419
  %v424 = vpack.c.bf16 %v423, %v422
  %v425 = vlaneseq
  %v426 = vshrl.u32 %v425, 7
  %v427 = vsub.s32 0, %v426
  %v428 = vrot.slane %v376, %v427
  %v445 = vunpack.c.l.b16 %v343
  %v446 = vunpack.c.l.b16 %v344
  %v447 = vunpack.c.l.b16 %v345
  %v448 = vunpack.c.l.b16 %v346
  %v449 = vunpack.c.l.b16 %v347
  %v450 = vunpack.c.l.b16 %v348
  %v451 = vunpack.c.l.b16 %v349
  %v452 = vunpack.c.l.b16 %v350
  %v453 = vunpack.c.l.b16 %v351
  %v454 = vunpack.c.l.b16 %v352
  %v455 = vunpack.c.l.b16 %v353
  %v456 = vunpack.c.l.b16 %v354
  %v457 = vunpack.c.l.b16 %v355
  %v458 = vunpack.c.l.b16 %v356
  %v459 = vunpack.c.l.b16 %v357
  %v460 = vunpack.c.l.b16 %v358
  %v461 = vpack.c.b16 %v446, %v445
  %v462 = vpack.c.b16 %v448, %v447
  %v463 = vpack.c.b16 %v450, %v449
  %v464 = vpack.c.b16 %v452, %v451
  %v465 = vpack.c.b16 %v454, %v453
  %v466 = vpack.c.b16 %v456, %v455
  %v467 = vpack.c.b16 %v458, %v457
  %v468 = vpack.c.b16 %v460, %v459
  %477 = vmatprep.subr.bf16.mxu0 0
  %478 = vmatpush1.bf16.msra.mxu0 %v461
  %479 = vmatprep.subr.bf16.mxu0 0
  %480 = vmatpush1.bf16.msra.mxu0 %v462
  %481 = vmatprep.subr.bf16.mxu0 0
  %482 = vmatpush1.bf16.msra.mxu0 %v463
  %483 = vmatprep.subr.bf16.mxu0 0
  %484 = vmatpush1.bf16.msra.mxu0 %v464
  %485 = vmatprep.subr.bf16.mxu0 0
  %486 = vmatpush1.bf16.msra.mxu0 %v465
  %487 = vmatprep.subr.bf16.mxu0 0
  %488 = vmatpush1.bf16.msra.mxu0 %v466
  %489 = vmatprep.subr.bf16.mxu0 0
  %490 = vmatpush1.bf16.msra.mxu0 %v467
  %491 = vmatprep.subr.bf16.mxu0 0
  %492 = vmatpush1.bf16.msra.mxu0 %v468
  %493 = vmatprep.subr.bf16.mxu0 0
  %494 = vmatpush1.bf16.msra.mxu0 0
  %495 = vmatprep.subr.bf16.mxu0 0
  %496 = vmatpush1.bf16.msra.mxu0 0
  %497 = vmatprep.subr.bf16.mxu0 0
  %498 = vmatpush1.bf16.msra.mxu0 0
  %499 = vmatprep.subr.bf16.mxu0 0
  %500 = vmatpush1.bf16.msra.mxu0 0
  %501 = vmatprep.subr.bf16.mxu0 0
  %502 = vmatpush1.bf16.msra.mxu0 0
  %503 = vmatprep.subr.bf16.mxu0 0
  %504 = vmatpush1.bf16.msra.mxu0 0
  %505 = vmatprep.subr.bf16.mxu0 0
  %506 = vmatpush1.bf16.msra.mxu0 0
  %507 = vmatprep.subr.bf16.mxu0 0
  %508 = vmatpush1.bf16.msra.mxu0 0
  %509 = vmatprep.mubr.bf16.mxu0 0
  %510 = vmatmul.mubr.bf16.gmra.mrb[0].mxu0 %v424
  %v511 = vpop.f32.mrb[0].mxu0
  %v512 = vadd.f32 %v428, %v511
  %v513 = vpop.f32.mrb[0].mxu0
  %v514 = vpop.f32.mrb[0].mxu0
  %v515 = vadd.f32 %v428, %v514
  %v516 = vpop.f32.mrb[0].mxu0
  %517 = vdwg.mxu0
  %v518 = vmax.f32 %v512, 0.0
  %v519 = vmax.f32 %v515, 0.0
  %v520 = vpack.c.bf16 %v519, %v518
  %v521 = vlaneseq
  %v522 = vshrl.u32 %v521, 7
  %v523 = vsub.s32 0, %v522
  %v524 = vrot.slane %v377, %v523
  %v541 = vunpack.c.l.b16 %v360
  %v542 = vunpack.c.l.b16 %v361
  %v543 = vunpack.c.l.b16 %v362
  %v544 = vunpack.c.l.b16 %v363
  %v545 = vunpack.c.l.b16 %v364
  %v546 = vunpack.c.l.b16 %v365
  %v547 = vunpack.c.l.b16 %v366
  %v548 = vunpack.c.l.b16 %v367
  %v549 = vunpack.c.l.b16 %v368
  %v550 = vunpack.c.l.b16 %v369
  %v551 = vunpack.c.l.b16 %v370
  %v552 = vunpack.c.l.b16 %v371
  %v553 = vunpack.c.l.b16 %v372
  %v554 = vunpack.c.l.b16 %v373
  %v555 = vunpack.c.l.b16 %v374
  %v556 = vunpack.c.l.b16 %v375
  %v557 = vpack.c.b16 %v542, %v541
  %v558 = vpack.c.b16 %v544, %v543
  %v559 = vpack.c.b16 %v546, %v545
  %v560 = vpack.c.b16 %v548, %v547
  %v561 = vpack.c.b16 %v550, %v549
  %v562 = vpack.c.b16 %v552, %v551
  %v563 = vpack.c.b16 %v554, %v553
  %v564 = vpack.c.b16 %v556, %v555
  %573 = vmatprep.subr.bf16.mxu0 0
  %574 = vmatpush1.bf16.msra.mxu0 %v557
  %575 = vmatprep.subr.bf16.mxu0 0
  %576 = vmatpush1.bf16.msra.mxu0 %v558
  %577 = vmatprep.subr.bf16.mxu0 0
  %578 = vmatpush1.bf16.msra.mxu0 %v559
  %579 = vmatprep.subr.bf16.mxu0 0
  %580 = vmatpush1.bf16.msra.mxu0 %v560
  %581 = vmatprep.subr.bf16.mxu0 0
  %582 = vmatpush1.bf16.msra.mxu0 %v561
  %583 = vmatprep.subr.bf16.mxu0 0
  %584 = vmatpush1.bf16.msra.mxu0 %v562
  %585 = vmatprep.subr.bf16.mxu0 0
  %586 = vmatpush1.bf16.msra.mxu0 %v563
  %587 = vmatprep.subr.bf16.mxu0 0
  %588 = vmatpush1.bf16.msra.mxu0 %v564
  %589 = vmatprep.subr.bf16.mxu0 0
  %590 = vmatpush1.bf16.msra.mxu0 0
  %591 = vmatprep.subr.bf16.mxu0 0
  %592 = vmatpush1.bf16.msra.mxu0 0
  %593 = vmatprep.subr.bf16.mxu0 0
  %594 = vmatpush1.bf16.msra.mxu0 0
  %595 = vmatprep.subr.bf16.mxu0 0
  %596 = vmatpush1.bf16.msra.mxu0 0
  %597 = vmatprep.subr.bf16.mxu0 0
  %598 = vmatpush1.bf16.msra.mxu0 0
  %599 = vmatprep.subr.bf16.mxu0 0
  %600 = vmatpush1.bf16.msra.mxu0 0
  %601 = vmatprep.subr.bf16.mxu0 0
  %602 = vmatpush1.bf16.msra.mxu0 0
  %603 = vmatprep.subr.bf16.mxu0 0
  %604 = vmatpush1.bf16.msra.mxu0 0
  %605 = vmatprep.mubr.bf16.mxu0 0
  %606 = vmatmul.mubr.bf16.gmra.mrb[0].mxu0 %v520
  %v607 = vpop.f32.mrb[0].mxu0
  %v608 = vadd.f32 %v524, %v607
  %v609 = vpop.f32.mrb[0].mxu0
  %v610 = vpop.f32.mrb[0].mxu0
  %v611 = vadd.f32 %v524, %v610
  %v612 = vpop.f32.mrb[0].mxu0
  %613 = vdwg.mxu0
  %v614 = vadd.f32 %v608, %v611
  %v615 = vrot.slane %v614, 4
  %v616 = vadd.f32 %v614, %v615
  %v617 = vrot.slane %v616, 2
  %v618 = vadd.f32 %v616, %v617
  %v619 = vrot.slane %v618, 1
  %v620 = vadd.f32 %v618, %v619
  %v621 = vmul.f32 %v620, 0.0625
  %v622 = vsub.f32 %v608, %v621
  %v623 = vsub.f32 %v611, %v621
  %v624 = vmul.f32 %v622, %v622
  %v625 = vmul.f32 %v623, %v623
  %v626 = vadd.f32 %v624, %v625
  %v627 = vrot.slane %v626, 4
  %v628 = vadd.f32 %v626, %v627
  %v629 = vrot.slane %v628, 2
  %v630 = vadd.f32 %v628, %v629
  %v631 = vrot.slane %v630, 1
  %v632 = vadd.f32 %v630, %v631
  %v633 = vmul.f32 %v632, 0.0625
  %v634 = vadd.f32 %v633, 1e-05
  %v635 = vrsqrt.pop %v634
  %v636 = vmul.f32 %v378, %v635
  %v637 = vlaneseq
  %v638 = vshrl.u32 %v637, 7
  %v639 = vsub.s32 0, %v638
  %v640 = vrot.slane %v636, %v639
  %v641 = vmul.f32 %v622, %v640
  %v642 = vmul.f32 %v623, %v640
  %v643 = vlaneseq
  %v644 = vshrl.u32 %v643, 7
  %v645 = vsub.s32 0, %v644
  %v646 = vrot.slane %v379, %v645
  %v647 = vadd.f32 %v641, %v646
  %v648 = vadd.f32 %v642, %v646
  %v649 = vmax.f32 %v647, 0.0
  %v650 = vmax.f32 %v648, 0.0
  %s651 = scalar_lea.vmem %s2, 256
  %v652 = vld [vmem:[%s651] sm:$0xf]
  %v653 = vld [vmem:[%s651 + $0x4] sm:$0xf]
  %v654 = vld [vmem:[%s651 + $0x8] sm:$0xf]
  %v655 = vld [vmem:[%s651 + $0xc] sm:$0xf]
  %v656 = vld [vmem:[%s651 + $0x10] sm:$0xf]
  %v657 = vld [vmem:[%s651 + $0x14] sm:$0xf]
  %v658 = vld [vmem:[%s651 + $0x18] sm:$0xf]
  %v659 = vld [vmem:[%s651 + $0x1c] sm:$0xf]
  %v660 = vld [vmem:[%s651 + $0x20] sm:$0xf]
  %v661 = vld [vmem:[%s651 + $0x24] sm:$0xf]
  %v662 = vld [vmem:[%s651 + $0x28] sm:$0xf]
  %v663 = vld [vmem:[%s651 + $0x2c] sm:$0xf]
  %v664 = vld [vmem:[%s651 + $0x30] sm:$0xf]
  %v665 = vld [vmem:[%s651 + $0x34] sm:$0xf]
  %v666 = vld [vmem:[%s651 + $0x38] sm:$0xf]
  %v667 = vld [vmem:[%s651 + $0x3c] sm:$0xf]
  %s668 = scalar_lea.vmem %s2, 320
  %v669 = vld [vmem:[%s668] sm:$0xf]
  %v670 = vld [vmem:[%s668 + $0x4] sm:$0xf]
  %v671 = vld [vmem:[%s668 + $0x8] sm:$0xf]
  %v672 = vld [vmem:[%s668 + $0xc] sm:$0xf]
  %v673 = vld [vmem:[%s668 + $0x10] sm:$0xf]
  %v674 = vld [vmem:[%s668 + $0x14] sm:$0xf]
  %v675 = vld [vmem:[%s668 + $0x18] sm:$0xf]
  %v676 = vld [vmem:[%s668 + $0x1c] sm:$0xf]
  %v677 = vld [vmem:[%s668 + $0x20] sm:$0xf]
  %v678 = vld [vmem:[%s668 + $0x24] sm:$0xf]
  %v679 = vld [vmem:[%s668 + $0x28] sm:$0xf]
  %v680 = vld [vmem:[%s668 + $0x2c] sm:$0xf]
  %v681 = vld [vmem:[%s668 + $0x30] sm:$0xf]
  %v682 = vld [vmem:[%s668 + $0x34] sm:$0xf]
  %v683 = vld [vmem:[%s668 + $0x38] sm:$0xf]
  %v684 = vld [vmem:[%s668 + $0x3c] sm:$0xf]
  %v685 = vld [vmem:[%s3 + $0x8] sm:$0x1]
  %v686 = vld [vmem:[%s3 + $0x9] sm:$0x1]
  %v687 = vld [vmem:[%s3 + $0xa] sm:$0x1]
  %v688 = vld [vmem:[%s3 + $0xb] sm:$0x1]
  %v689 = vpack.c.bf16 %v650, %v649
  %690 = vmatprep.subr.bf16.mxu0 0
  %691 = vmatpush1.bf16.msra.mxu0 %v689
  %692 = vmatprep.subr.bf16.mxu0 0
  %693 = vmatpush1.bf16.msra.mxu0 0
  %694 = vmatprep.subr.bf16.mxu0 0
  %695 = vmatpush1.bf16.msra.mxu0 0
  %696 = vmatprep.subr.bf16.mxu0 0
  %697 = vmatpush1.bf16.msra.mxu0 0
  %698 = vmatprep.subr.bf16.mxu0 0
  %699 = vmatpush1.bf16.msra.mxu0 0
  %700 = vmatprep.subr.bf16.mxu0 0
  %701 = vmatpush1.bf16.msra.mxu0 0
  %702 = vmatprep.subr.bf16.mxu0 0
  %703 = vmatpush1.bf16.msra.mxu0 0
  %704 = vmatprep.subr.bf16.mxu0 0
  %705 = vmatpush1.bf16.msra.mxu0 0
  %706 = vmatprep.subr.bf16.mxu0 0
  %707 = vmatpush1.bf16.msra.mxu0 0
  %708 = vmatprep.subr.bf16.mxu0 0
  %709 = vmatpush1.bf16.msra.mxu0 0
  %710 = vmatprep.subr.bf16.mxu0 0
  %711 = vmatpush1.bf16.msra.mxu0 0
  %712 = vmatprep.subr.bf16.mxu0 0
  %713 = vmatpush1.bf16.msra.mxu0 0
  %714 = vmatprep.subr.bf16.mxu0 0
  %715 = vmatpush1.bf16.msra.mxu0 0
  %716 = vmatprep.subr.bf16.mxu0 0
  %717 = vmatpush1.bf16.msra.mxu0 0
  %718 = vmatprep.subr.bf16.mxu0 0
  %719 = vmatpush1.bf16.msra.mxu0 0
  %720 = vmatprep.subr.bf16.mxu0 0
  %721 = vmatpush1.bf16.msra.mxu0 0
  %722 = vmatprep.mubr.bf16.mxu0 0
  %723 = vmatmul.mubr.bf16.gmra.mrb[0].mxu0 %v70
  %v724 = vpop.f32.mrb[0].mxu0
  %v725 = vadd.f32 0.0, %v724
  %v726 = vpop.f32.mrb[0].mxu0
  %v727 = vpop.f32.mrb[0].mxu0
  %v728 = vadd.f32 0.0, %v727
  %v729 = vpop.f32.mrb[0].mxu0
  %730 = vdwg.mxu0
  %v731 = vadd.f32 %v649, %v725
  %v732 = vadd.f32 %v650, %v728
  %v733 = vpack.c.bf16 %v732, %v731
  %v734 = vlaneseq
  %v735 = vshrl.u32 %v734, 7
  %v736 = vsub.s32 0, %v735
  %v737 = vrot.slane %v685, %v736
  %v754 = vunpack.c.l.b16 %v652
  %v755 = vunpack.c.l.b16 %v653
  %v756 = vunpack.c.l.b16 %v654
  %v757 = vunpack.c.l.b16 %v655
  %v758 = vunpack.c.l.b16 %v656
  %v759 = vunpack.c.l.b16 %v657
  %v760 = vunpack.c.l.b16 %v658
  %v761 = vunpack.c.l.b16 %v659
  %v762 = vunpack.c.l.b16 %v660
  %v763 = vunpack.c.l.b16 %v661
  %v764 = vunpack.c.l.b16 %v662
  %v765 = vunpack.c.l.b16 %v663
  %v766 = vunpack.c.l.b16 %v664
  %v767 = vunpack.c.l.b16 %v665
  %v768 = vunpack.c.l.b16 %v666
  %v769 = vunpack.c.l.b16 %v667
  %v770 = vpack.c.b16 %v755, %v754
  %v771 = vpack.c.b16 %v757, %v756
  %v772 = vpack.c.b16 %v759, %v758
  %v773 = vpack.c.b16 %v761, %v760
  %v774 = vpack.c.b16 %v763, %v762
  %v775 = vpack.c.b16 %v765, %v764
  %v776 = vpack.c.b16 %v767, %v766
  %v777 = vpack.c.b16 %v769, %v768
  %786 = vmatprep.subr.bf16.mxu0 0
  %787 = vmatpush1.bf16.msra.mxu0 %v770
  %788 = vmatprep.subr.bf16.mxu0 0
  %789 = vmatpush1.bf16.msra.mxu0 %v771
  %790 = vmatprep.subr.bf16.mxu0 0
  %791 = vmatpush1.bf16.msra.mxu0 %v772
  %792 = vmatprep.subr.bf16.mxu0 0
  %793 = vmatpush1.bf16.msra.mxu0 %v773
  %794 = vmatprep.subr.bf16.mxu0 0
  %795 = vmatpush1.bf16.msra.mxu0 %v774
  %796 = vmatprep.subr.bf16.mxu0 0
  %797 = vmatpush1.bf16.msra.mxu0 %v775
  %798 = vmatprep.subr.bf16.mxu0 0
  %799 = vmatpush1.bf16.msra.mxu0 %v776
  %800 = vmatprep.subr.bf16.mxu0 0
  %801 = vmatpush1.bf16.msra.mxu0 %v777
  %802 = vmatprep.subr.bf16.mxu0 0
  %803 = vmatpush1.bf16.msra.mxu0 0
  %804 = vmatprep.subr.bf16.mxu0 0
  %805 = vmatpush1.bf16.msra.mxu0 0
  %806 = vmatprep.subr.bf16.mxu0 0
  %807 = vmatpush1.bf16.msra.mxu0 0
  %808 = vmatprep.subr.bf16.mxu0 0
  %809 = vmatpush1.bf16.msra.mxu0 0
  %810 = vmatprep.subr.bf16.mxu0 0
  %811 = vmatpush1.bf16.msra.mxu0 0
  %812 = vmatprep.subr.bf16.mxu0 0
  %813 = vmatpush1.bf16.msra.mxu0 0
  %814 = vmatprep.subr.bf16.mxu0 0
  %815 = vmatpush1.bf16.msra.mxu0 0
  %816 = vmatprep.subr.bf16.mxu0 0
  %817 = vmatpush1.bf16.msra.mxu0 0
  %818 = vmatprep.mubr.bf16.mxu0 0
  %819 = vmatmul.mubr.bf16.gmra.mrb[0].mxu0 %v733
  %v820 = vpop.f32.mrb[0].mxu0
  %v821 = vadd.f32 %v737, %v820
  %v822 = vpop.f32.mrb[0].mxu0
  %v823 = vpop.f32.mrb[0].mxu0
  %v824 = vadd.f32 %v737, %v823
  %v825 = vpop.f32.mrb[0].mxu0
  %826 = vdwg.mxu0
  %v827 = vmax.f32 %v821, 0.0
  %v828 = vmax.f32 %v824, 0.0
  %v829 = vpack.c.bf16 %v828, %v827
  %v830 = vlaneseq
  %v831 = vshrl.u32 %v830, 7
  %v832 = vsub.s32 0, %v831
  %v833 = vrot.slane %v686, %v832
  %v850 = vunpack.c.l.b16 %v669
  %v851 = vunpack.c.l.b16 %v670
  %v852 = vunpack.c.l.b16 %v671
  %v853 = vunpack.c.l.b16 %v672
  %v854 = vunpack.c.l.b16 %v673
  %v855 = vunpack.c.l.b16 %v674
  %v856 = vunpack.c.l.b16 %v675
  %v857 = vunpack.c.l.b16 %v676
  %v858 = vunpack.c.l.b16 %v677
  %v859 = vunpack.c.l.b16 %v678
  %v860 = vunpack.c.l.b16 %v679
  %v861 = vunpack.c.l.b16 %v680
  %v862 = vunpack.c.l.b16 %v681
  %v863 = vunpack.c.l.b16 %v682
  %v864 = vunpack.c.l.b16 %v683
  %v865 = vunpack.c.l.b16 %v684
  %v866 = vpack.c.b16 %v851, %v850
  %v867 = vpack.c.b16 %v853, %v852
  %v868 = vpack.c.b16 %v855, %v854
  %v869 = vpack.c.b16 %v857, %v856
  %v870 = vpack.c.b16 %v859, %v858
  %v871 = vpack.c.b16 %v861, %v860
  %v872 = vpack.c.b16 %v863, %v862
  %v873 = vpack.c.b16 %v865, %v864
  %882 = vmatprep.subr.bf16.mxu0 0
  %883 = vmatpush1.bf16.msra.mxu0 %v866
  %884 = vmatprep.subr.bf16.mxu0 0
  %885 = vmatpush1.bf16.msra.mxu0 %v867
  %886 = vmatprep.subr.bf16.mxu0 0
  %887 = vmatpush1.bf16.msra.mxu0 %v868
  %888 = vmatprep.subr.bf16.mxu0 0
  %889 = vmatpush1.bf16.msra.mxu0 %v869
  %890 = vmatprep.subr.bf16.mxu0 0
  %891 = vmatpush1.bf16.msra.mxu0 %v870
  %892 = vmatprep.subr.bf16.mxu0 0
  %893 = vmatpush1.bf16.msra.mxu0 %v871
  %894 = vmatprep.subr.bf16.mxu0 0
  %895 = vmatpush1.bf16.msra.mxu0 %v872
  %896 = vmatprep.subr.bf16.mxu0 0
  %897 = vmatpush1.bf16.msra.mxu0 %v873
  %898 = vmatprep.subr.bf16.mxu0 0
  %899 = vmatpush1.bf16.msra.mxu0 0
  %900 = vmatprep.subr.bf16.mxu0 0
  %901 = vmatpush1.bf16.msra.mxu0 0
  %902 = vmatprep.subr.bf16.mxu0 0
  %903 = vmatpush1.bf16.msra.mxu0 0
  %904 = vmatprep.subr.bf16.mxu0 0
  %905 = vmatpush1.bf16.msra.mxu0 0
  %906 = vmatprep.subr.bf16.mxu0 0
  %907 = vmatpush1.bf16.msra.mxu0 0
  %908 = vmatprep.subr.bf16.mxu0 0
  %909 = vmatpush1.bf16.msra.mxu0 0
  %910 = vmatprep.subr.bf16.mxu0 0
  %911 = vmatpush1.bf16.msra.mxu0 0
  %912 = vmatprep.subr.bf16.mxu0 0
  %913 = vmatpush1.bf16.msra.mxu0 0
  %914 = vmatprep.mubr.bf16.mxu0 0
  %915 = vmatmul.mubr.bf16.gmra.mrb[0].mxu0 %v829
  %v916 = vpop.f32.mrb[0].mxu0
  %v917 = vadd.f32 %v833, %v916
  %v918 = vpop.f32.mrb[0].mxu0
  %v919 = vpop.f32.mrb[0].mxu0
  %v920 = vadd.f32 %v833, %v919
  %v921 = vpop.f32.mrb[0].mxu0
  %922 = vdwg.mxu0
  %v923 = vadd.f32 %v917, %v920
  %v924 = vrot.slane %v923, 4
  %v925 = vadd.f32 %v923, %v924
  %v926 = vrot.slane %v925, 2
  %v927 = vadd.f32 %v925, %v926
  %v928 = vrot.slane %v927, 1
  %v929 = vadd.f32 %v927, %v928
  %v930 = vmul.f32 %v929, 0.0625
  %v931 = vsub.f32 %v917, %v930
  %v932 = vsub.f32 %v920, %v930
  %v933 = vmul.f32 %v931, %v931
  %v934 = vmul.f32 %v932, %v932
  %v935 = vadd.f32 %v933, %v934
  %v936 = vrot.slane %v935, 4
  %v937 = vadd.f32 %v935, %v936
  %v938 = vrot.slane %v937, 2
  %v939 = vadd.f32 %v937, %v938
  %v940 = vrot.slane %v939, 1
  %v941 = vadd.f32 %v939, %v940
  %v942 = vmul.f32 %v941, 0.0625
  %v943 = vadd.f32 %v942, 1e-05
  %v944 = vrsqrt.pop %v943
  %v945 = vmul.f32 %v687, %v944
  %v946 = vlaneseq
  %v947 = vshrl.u32 %v946, 7
  %v948 = vsub.s32 0, %v947
  %v949 = vrot.slane %v945, %v948
  %v950 = vmul.f32 %v931, %v949
  %v951 = vmul.f32 %v932, %v949
  %v952 = vlaneseq
  %v953 = vshrl.u32 %v952, 7
  %v954 = vsub.s32 0, %v953
  %v955 = vrot.slane %v688, %v954
  %v956 = vadd.f32 %v950, %v955
  %v957 = vadd.f32 %v951, %v955
  %v958 = vmax.f32 %v956, 0.0
  %v959 = vmax.f32 %v957, 0.0
  %v960 = vld [vmem:[%s4] sm:$0xf]
  %v961 = vpack.c.bf16 %v959, %v958
  %v963 = vsel %vm68, %v960, 0
  %965 = vmatprep.subr.bf16.mxu0 0
  %966 = vmatpush1.bf16.msra.mxu0 %v961
  %967 = vmatprep.subr.bf16.mxu0 0
  %968 = vmatpush1.bf16.msra.mxu0 0
  %969 = vmatprep.subr.bf16.mxu0 0
  %970 = vmatpush1.bf16.msra.mxu0 0
  %971 = vmatprep.subr.bf16.mxu0 0
  %972 = vmatpush1.bf16.msra.mxu0 0
  %973 = vmatprep.subr.bf16.mxu0 0
  %974 = vmatpush1.bf16.msra.mxu0 0
  %975 = vmatprep.subr.bf16.mxu0 0
  %976 = vmatpush1.bf16.msra.mxu0 0
  %977 = vmatprep.subr.bf16.mxu0 0
  %978 = vmatpush1.bf16.msra.mxu0 0
  %979 = vmatprep.subr.bf16.mxu0 0
  %980 = vmatpush1.bf16.msra.mxu0 0
  %981 = vmatprep.subr.bf16.mxu0 0
  %982 = vmatpush1.bf16.msra.mxu0 0
  %983 = vmatprep.subr.bf16.mxu0 0
  %984 = vmatpush1.bf16.msra.mxu0 0
  %985 = vmatprep.subr.bf16.mxu0 0
  %986 = vmatpush1.bf16.msra.mxu0 0
  %987 = vmatprep.subr.bf16.mxu0 0
  %988 = vmatpush1.bf16.msra.mxu0 0
  %989 = vmatprep.subr.bf16.mxu0 0
  %990 = vmatpush1.bf16.msra.mxu0 0
  %991 = vmatprep.subr.bf16.mxu0 0
  %992 = vmatpush1.bf16.msra.mxu0 0
  %993 = vmatprep.subr.bf16.mxu0 0
  %994 = vmatpush1.bf16.msra.mxu0 0
  %995 = vmatprep.subr.bf16.mxu0 0
  %996 = vmatpush1.bf16.msra.mxu0 0
  %997 = vmatprep.mubr.bf16.mxu0 0
  %998 = vmatmul.mubr.bf16.gmra.mrb[0].mxu0 %v963
  %v999 = vpop.f32.mrb[0].mxu0
  %v1000 = vadd.f32 0.0, %v999
  %v1001 = vpop.f32.mrb[0].mxu0
  %v1002 = vpop.f32.mrb[0].mxu0
  %v1003 = vpop.f32.mrb[0].mxu0
  %1004 = vdwg.mxu0
  %v1005 = vpack.c.bf16 %v1000, %v1000
  %s1006 = scalar_lea.vmem %s2, 384
  %v1007 = vld [vmem:[%s1006] sm:$0xf]
  %v1008 = vld [vmem:[%s1006 + $0x4] sm:$0xf]
  %v1009 = vld [vmem:[%s1006 + $0x8] sm:$0xf]
  %v1010 = vld [vmem:[%s1006 + $0xc] sm:$0xf]
  %v1011 = vld [vmem:[%s1006 + $0x10] sm:$0xf]
  %v1012 = vld [vmem:[%s1006 + $0x14] sm:$0xf]
  %v1013 = vld [vmem:[%s1006 + $0x18] sm:$0xf]
  %v1014 = vld [vmem:[%s1006 + $0x1c] sm:$0xf]
  %v1015 = vld [vmem:[%s1006 + $0x20] sm:$0xf]
  %v1016 = vld [vmem:[%s1006 + $0x24] sm:$0xf]
  %v1017 = vld [vmem:[%s1006 + $0x28] sm:$0xf]
  %v1018 = vld [vmem:[%s1006 + $0x2c] sm:$0xf]
  %v1019 = vld [vmem:[%s1006 + $0x30] sm:$0xf]
  %v1020 = vld [vmem:[%s1006 + $0x34] sm:$0xf]
  %v1021 = vld [vmem:[%s1006 + $0x38] sm:$0xf]
  %v1022 = vld [vmem:[%s1006 + $0x3c] sm:$0xf]
  %v1023 = vld [vmem:[%s3 + $0xc] sm:$0x1]
  %v1024 = vlaneseq
  %v1025 = vshrl.u32 %v1024, 7
  %v1026 = vsub.s32 0, %v1025
  %v1027 = vrot.slane %v1023, %v1026
  %v1044 = vunpack.c.l.b16 %v1007
  %v1045 = vunpack.c.l.b16 %v1008
  %v1046 = vunpack.c.l.b16 %v1009
  %v1047 = vunpack.c.l.b16 %v1010
  %v1048 = vunpack.c.l.b16 %v1011
  %v1049 = vunpack.c.l.b16 %v1012
  %v1050 = vunpack.c.l.b16 %v1013
  %v1051 = vunpack.c.l.b16 %v1014
  %v1052 = vunpack.c.l.b16 %v1015
  %v1053 = vunpack.c.l.b16 %v1016
  %v1054 = vunpack.c.l.b16 %v1017
  %v1055 = vunpack.c.l.b16 %v1018
  %v1056 = vunpack.c.l.b16 %v1019
  %v1057 = vunpack.c.l.b16 %v1020
  %v1058 = vunpack.c.l.b16 %v1021
  %v1059 = vunpack.c.l.b16 %v1022
  %v1060 = vpack.c.b16 %v1045, %v1044
  %v1061 = vpack.c.b16 %v1047, %v1046
  %v1062 = vpack.c.b16 %v1049, %v1048
  %v1063 = vpack.c.b16 %v1051, %v1050
  %v1064 = vpack.c.b16 %v1053, %v1052
  %v1065 = vpack.c.b16 %v1055, %v1054
  %v1066 = vpack.c.b16 %v1057, %v1056
  %v1067 = vpack.c.b16 %v1059, %v1058
  %1076 = vmatprep.subr.bf16.mxu0 0
  %1077 = vmatpush1.bf16.msra.mxu0 %v1060
  %1078 = vmatprep.subr.bf16.mxu0 0
  %1079 = vmatpush1.bf16.msra.mxu0 %v1061
  %1080 = vmatprep.subr.bf16.mxu0 0
  %1081 = vmatpush1.bf16.msra.mxu0 %v1062
  %1082 = vmatprep.subr.bf16.mxu0 0
  %1083 = vmatpush1.bf16.msra.mxu0 %v1063
  %1084 = vmatprep.subr.bf16.mxu0 0
  %1085 = vmatpush1.bf16.msra.mxu0 %v1064
  %1086 = vmatprep.subr.bf16.mxu0 0
  %1087 = vmatpush1.bf16.msra.mxu0 %v1065
  %1088 = vmatprep.subr.bf16.mxu0 0
  %1089 = vmatpush1.bf16.msra.mxu0 %v1066
  %1090 = vmatprep.subr.bf16.mxu0 0
  %1091 = vmatpush1.bf16.msra.mxu0 %v1067
  %1092 = vmatprep.subr.bf16.mxu0 0
  %1093 = vmatpush1.bf16.msra.mxu0 0
  %1094 = vmatprep.subr.bf16.mxu0 0
  %1095 = vmatpush1.bf16.msra.mxu0 0
  %1096 = vmatprep.subr.bf16.mxu0 0
  %1097 = vmatpush1.bf16.msra.mxu0 0
  %1098 = vmatprep.subr.bf16.mxu0 0
  %1099 = vmatpush1.bf16.msra.mxu0 0
  %1100 = vmatprep.subr.bf16.mxu0 0
  %1101 = vmatpush1.bf16.msra.mxu0 0
  %1102 = vmatprep.subr.bf16.mxu0 0
  %1103 = vmatpush1.bf16.msra.mxu0 0
  %1104 = vmatprep.subr.bf16.mxu0 0
  %1105 = vmatpush1.bf16.msra.mxu0 0
  %1106 = vmatprep.subr.bf16.mxu0 0
  %1107 = vmatpush1.bf16.msra.mxu0 0
  %1108 = vmatprep.mubr.bf16.mxu0 0
  %1109 = vmatmul.mubr.bf16.gmra.mrb[0].mxu0 %v1005
  %v1110 = vpop.f32.mrb[0].mxu0
  %v1111 = vadd.f32 %v1027, %v1110
  %v1112 = vpop.f32.mrb[0].mxu0
  %v1113 = vpop.f32.mrb[0].mxu0
  %v1114 = vpop.f32.mrb[0].mxu0
  %1115 = vdwg.mxu0
  %v1116 = vmax.f32 %v1111, 0.0
  %v1117 = vpack.c.bf16 %v1116, %v1116
  %s1118 = scalar_lea.vmem %s2, 448
  %v1119 = vld [vmem:[%s1118] sm:$0xf]
  %v1120 = vld [vmem:[%s1118 + $0x4] sm:$0xf]
  %v1121 = vld [vmem:[%s1118 + $0x8] sm:$0xf]
  %v1122 = vld [vmem:[%s1118 + $0xc] sm:$0xf]
  %v1123 = vld [vmem:[%s1118 + $0x10] sm:$0xf]
  %v1124 = vld [vmem:[%s1118 + $0x14] sm:$0xf]
  %v1125 = vld [vmem:[%s1118 + $0x18] sm:$0xf]
  %v1126 = vld [vmem:[%s1118 + $0x1c] sm:$0xf]
  %v1127 = vld [vmem:[%s1118 + $0x20] sm:$0xf]
  %v1128 = vld [vmem:[%s1118 + $0x24] sm:$0xf]
  %v1129 = vld [vmem:[%s1118 + $0x28] sm:$0xf]
  %v1130 = vld [vmem:[%s1118 + $0x2c] sm:$0xf]
  %v1131 = vld [vmem:[%s1118 + $0x30] sm:$0xf]
  %v1132 = vld [vmem:[%s1118 + $0x34] sm:$0xf]
  %v1133 = vld [vmem:[%s1118 + $0x38] sm:$0xf]
  %v1134 = vld [vmem:[%s1118 + $0x3c] sm:$0xf]
  %v1135 = vld [vmem:[%s3 + $0xd] sm:$0x1]
  %v1136 = vlaneseq
  %v1137 = vshrl.u32 %v1136, 7
  %v1138 = vsub.s32 0, %v1137
  %v1139 = vrot.slane %v1135, %v1138
  %v1156 = vunpack.c.l.b16 %v1119
  %v1157 = vunpack.c.l.b16 %v1120
  %v1158 = vunpack.c.l.b16 %v1121
  %v1159 = vunpack.c.l.b16 %v1122
  %v1160 = vunpack.c.l.b16 %v1123
  %v1161 = vunpack.c.l.b16 %v1124
  %v1162 = vunpack.c.l.b16 %v1125
  %v1163 = vunpack.c.l.b16 %v1126
  %v1164 = vunpack.c.l.b16 %v1127
  %v1165 = vunpack.c.l.b16 %v1128
  %v1166 = vunpack.c.l.b16 %v1129
  %v1167 = vunpack.c.l.b16 %v1130
  %v1168 = vunpack.c.l.b16 %v1131
  %v1169 = vunpack.c.l.b16 %v1132
  %v1170 = vunpack.c.l.b16 %v1133
  %v1171 = vunpack.c.l.b16 %v1134
  %v1172 = vpack.c.b16 %v1157, %v1156
  %v1173 = vpack.c.b16 %v1159, %v1158
  %v1174 = vpack.c.b16 %v1161, %v1160
  %v1175 = vpack.c.b16 %v1163, %v1162
  %v1176 = vpack.c.b16 %v1165, %v1164
  %v1177 = vpack.c.b16 %v1167, %v1166
  %v1178 = vpack.c.b16 %v1169, %v1168
  %v1179 = vpack.c.b16 %v1171, %v1170
  %1188 = vmatprep.subr.bf16.mxu0 0
  %1189 = vmatpush1.bf16.msra.mxu0 %v1172
  %1190 = vmatprep.subr.bf16.mxu0 0
  %1191 = vmatpush1.bf16.msra.mxu0 %v1173
  %1192 = vmatprep.subr.bf16.mxu0 0
  %1193 = vmatpush1.bf16.msra.mxu0 %v1174
  %1194 = vmatprep.subr.bf16.mxu0 0
  %1195 = vmatpush1.bf16.msra.mxu0 %v1175
  %1196 = vmatprep.subr.bf16.mxu0 0
  %1197 = vmatpush1.bf16.msra.mxu0 %v1176
  %1198 = vmatprep.subr.bf16.mxu0 0
  %1199 = vmatpush1.bf16.msra.mxu0 %v1177
  %1200 = vmatprep.subr.bf16.mxu0 0
  %1201 = vmatpush1.bf16.msra.mxu0 %v1178
  %1202 = vmatprep.subr.bf16.mxu0 0
  %1203 = vmatpush1.bf16.msra.mxu0 %v1179
  %1204 = vmatprep.subr.bf16.mxu0 0
  %1205 = vmatpush1.bf16.msra.mxu0 0
  %1206 = vmatprep.subr.bf16.mxu0 0
  %1207 = vmatpush1.bf16.msra.mxu0 0
  %1208 = vmatprep.subr.bf16.mxu0 0
  %1209 = vmatpush1.bf16.msra.mxu0 0
  %1210 = vmatprep.subr.bf16.mxu0 0
  %1211 = vmatpush1.bf16.msra.mxu0 0
  %1212 = vmatprep.subr.bf16.mxu0 0
  %1213 = vmatpush1.bf16.msra.mxu0 0
  %1214 = vmatprep.subr.bf16.mxu0 0
  %1215 = vmatpush1.bf16.msra.mxu0 0
  %1216 = vmatprep.subr.bf16.mxu0 0
  %1217 = vmatpush1.bf16.msra.mxu0 0
  %1218 = vmatprep.subr.bf16.mxu0 0
  %1219 = vmatpush1.bf16.msra.mxu0 0
  %1220 = vmatprep.mubr.bf16.mxu0 0
  %1221 = vmatmul.mubr.bf16.gmra.mrb[0].mxu0 %v1117
  %v1222 = vpop.f32.mrb[0].mxu0
  %v1223 = vadd.f32 %v1139, %v1222
  %v1224 = vpop.f32.mrb[0].mxu0
  %v1225 = vpop.f32.mrb[0].mxu0
  %v1226 = vpop.f32.mrb[0].mxu0
  %1227 = vdwg.mxu0
  %1228 = vst [vmem:[%s5] sm:$0xff] %v1223
  // Predicated region
  $region22: #{my_gin_forward.1} parent=0 // pred_check
    _
  $region23: #{my_gin_forward.1} parent=0 // pred_check_branch
    %1230 = sbr.rel (0) target = $region25
  $region24: #{my_gin_forward.1} parent=0 // pred_region
    _
  $region25: #{my_gin_forward.1} parent=0 // pred_fallthru
    _
  // Predicated region
  $region26: #{my_gin_forward.1} parent=0 // pred_check
    _
  $region27: #{my_gin_forward.1} parent=0 // pred_check_branch
    %1232 = sbr.rel (0) target = $region29
  $region28: #{my_gin_forward.1} parent=0 // pred_region
    _
  $region29: #{my_gin_forward.1} parent=0 // pred_fallthru
    _

</llo_original>
